<compile_context>
chip_gen: v7x
topology: tpu7x:2x2x1
jax: 0.10.0
libtpu: 0.0.40
codegen_flags: <defaults>
</compile_context>

<pallas_src>
import functools

import jax
import jax.numpy as jnp
from jax.experimental import pallas as pl
from jax.experimental.pallas import tpu as pltpu


def _rehu_kernel(x_ref, o_ref, *, a, b):
    x = x_ref[...]
    # sign(x) * a/2 * x^2  ==  (a/2) * x * |x|
    quad = (a * 0.5) * x * jnp.abs(x)
    clamped = jnp.clip(quad, 0.0, -b)          # clamp to [0, -b]   (assumes d > 0)
    o_ref[...] = jnp.maximum(clamped, x + b)   # max with linear branch


def rehu(x, d=1.0, *, block_rows=1024):
    """Rectified Huber unit, elementwise, any input shape (d must be > 0)."""
    assert d > 0, "ReHU clamp bounds assume d > 0 (matches PyTorch usage)."
    a = 1.0 / d
    b = -d / 2.0

    orig_shape = x.shape
    orig_dtype = x.dtype
    n = x.size

    lanes = 128
    rows = pl.cdiv(n, lanes)

    flat = x.reshape(-1)
    n_lane_padded = rows * lanes
    padded = n_lane_padded != n
    if padded:
        # Only pad the ragged lane tail (n % 128 != 0); rows are NOT padded —
        # Pallas handles the partial last row-block.
        flat = jnp.pad(flat, (0, n_lane_padded - n))
    slab = flat.reshape(rows, lanes)

    # Cap the block to the (8-rounded) row count so tiny inputs stay cheap;
    # keep the second-to-last block dim a multiple of 8.
    rows_rounded8 = ((rows + 7) // 8) * 8
    block_rows_eff = max(8, min(block_rows, rows_rounded8))

    grid = (pl.cdiv(rows, block_rows_eff),)

    # VMEM budget: (in + out) x double-buffer x tile, with headroom; stays
    # well under v7x's 64 MiB physical VMEM.
    tile_bytes = block_rows_eff * lanes * jnp.dtype(orig_dtype).itemsize
    vmem_limit = int(min(48 * 1024 * 1024, max(16 * 1024 * 1024, 8 * tile_bytes)))

    out = pl.pallas_call(
        functools.partial(_rehu_kernel, a=a, b=b),
        out_shape=jax.ShapeDtypeStruct((rows, lanes), orig_dtype),
        grid_spec=pltpu.PrefetchScalarGridSpec(
            num_scalar_prefetch=0,
            grid=grid,
            in_specs=[pl.BlockSpec((block_rows_eff, lanes), lambda i: (i, 0))],
            out_specs=pl.BlockSpec((block_rows_eff, lanes), lambda i: (i, 0)),
        ),
        compiler_params=pltpu.CompilerParams(
            dimension_semantics=("parallel",),
            vmem_limit_bytes=vmem_limit,
        ),
    )(slab)

    if padded:
        return out.reshape(-1)[:n].reshape(orig_shape)
    return out.reshape(orig_shape)


def rehu_reference(x, d=1.0):
    """Pure-JAX reference matching the PyTorch forward exactly."""
    a = 1.0 / d
    b = -d / 2.0
    return jnp.maximum(jnp.clip(jnp.sign(x) * a / 2 * x ** 2, 0.0, -b), x + b)


if __name__ == "__main__":
    key = jax.random.PRNGKey(0)
    # NCHW-style input, as a PyTorch conv feature map would be.
    x = jax.random.normal(key, (2, 4, 16, 16), dtype=jnp.float32)

    d = 1.0  # ReHU(d) hyperparameter (deterministic, set in-script)

    y = rehu(x, d=d)
    y = jax.block_until_ready(y)

    y_ref = rehu_reference(x, d=d)
    assert y.shape == x.shape and y.dtype == x.dtype
    assert jnp.allclose(y, y_ref, atol=1e-6, rtol=1e-6)

    print("KERNEL_OK")
</pallas_src>

<mosaic_0001>
module attributes {stable_mosaic.version = 11 : i64} {
  func.func @_rehu_kernel(%arg0: i32, %arg1: memref<16x128xf32, #tpu.memory_space<vmem>>, %arg2: memref<16x128xf32, #tpu.memory_space<vmem>>) attributes {dimension_semantics = [#tpu.dimension_semantics<parallel>], iteration_bounds = array<i64: 1>, scalar_prefetch = 0 : i64, scratch_operands = 0 : i64, tpu.core_type = #tpu.core_type<tc>, window_params = [{transform_indices = @transform_0, window_bounds = array<i64: 16, 128>}, {transform_indices = @transform_1, window_bounds = array<i64: 16, 128>}]} {
    %c0 = arith.constant 0 : index
    %c0_0 = arith.constant 0 : index
    %0 = vector.load %arg1[%c0, %c0_0] : memref<16x128xf32, #tpu.memory_space<vmem>>, vector<16x128xf32>
    %cst = arith.constant 5.000000e-01 : f32
    %1 = vector.broadcast %cst : f32 to vector<16x128xf32>
    %2 = arith.mulf %1, %0 : vector<16x128xf32>
    %3 = math.absf %0 : vector<16x128xf32>
    %4 = arith.mulf %2, %3 : vector<16x128xf32>
    %cst_1 = arith.constant 0.000000e+00 : f32
    %cst_2 = arith.constant 5.000000e-01 : f32
    %5 = vector.broadcast %cst_1 : f32 to vector<16x128xf32>
    %6 = arith.maximumf %5, %4 : vector<16x128xf32>
    %7 = vector.broadcast %cst_2 : f32 to vector<16x128xf32>
    %8 = arith.minimumf %7, %6 : vector<16x128xf32>
    %cst_3 = arith.constant -5.000000e-01 : f32
    %9 = vector.broadcast %cst_3 : f32 to vector<16x128xf32>
    %10 = arith.addf %0, %9 : vector<16x128xf32>
    %11 = arith.maximumf %8, %10 : vector<16x128xf32>
    %c0_4 = arith.constant 0 : index
    %c0_5 = arith.constant 0 : index
    %12 = vector.load %arg2[%c0_4, %c0_5] : memref<16x128xf32, #tpu.memory_space<vmem>>, vector<16x128xf32>
    tpu.vector_store %arg2[%c0_4, %c0_5], %11 {strides = array<i32>} : memref<16x128xf32, #tpu.memory_space<vmem>>, vector<16x128xf32>,
    return
  }
  func.func @transform_0(%arg0: i32) -> (i32, i32) {
    %c0_i32 = arith.constant 0 : i32
    %c0_i32_0 = arith.constant 0 : i32
    return %arg0, %c0_i32 : i32, i32
  }
  func.func @transform_1(%arg0: i32) -> (i32, i32) {
    %c0_i32 = arith.constant 0 : i32
    %c0_i32_0 = arith.constant 0 : i32
    return %arg0, %c0_i32 : i32, i32
  }
}

</mosaic_0001>

<llo_original>
// kernel: tpu_custom_call.1
$region0: #{tpu_custom_call.1}
  #allocation0 [shape = 'u32[]', space=smem, size = 0x4, offset = 0x4, fixed_abs, tag = 'smem constant byte address 0x4 - core index']
  #allocation1 [shape = 'u32[144,128]{1,0:T(1,128)}', space=vmem, size = 0x12000, scoped, tag = 'internal scratch']
  %s0 = inlined_call_operand.hbm [shape: f32[16,128], index: 0, kind: input, shape index: {}]
  %s1 = inlined_call_operand.hbm [shape: f32[16,128], index: 1, kind: output, shape index: {}]
  %s2 = sld [smem:[#allocation0]]
  $region18: #{tpu_custom_call.1} parent=0
    _
  %s4 = ssub.s32 1, %s2
  %s5 = scalar_select 0, %s4, %s2
  $region1: #{tpu_custom_call.1} parent=0
    #allocation2 [shape = 'u8[8192]{0}', space=vmem, size = 0x2000, scoped, tag = 'input window, operand 0, single buffered']
    #allocation3 [shape = 's32[1]{0}', space=sflag, size = 0x4, scoped, tag = 'scoped memory for tpu_custom_call.1']
    #allocation4 [shape = 's32[1]{0}', space=sflag, size = 0x4, scoped, tag = 'scoped memory for tpu_custom_call.1']
    #allocation5 [shape = 'u8[8192]{0}', space=vmem, size = 0x2000, scoped, tag = 'output window, operand 0, single buffered']
    %6 = vsyncpa [#allocation3], 0
    %7 = vsyncpa [#allocation4], 0
    // Predicated region
    $region2: #{tpu_custom_call.1} parent=1 // pred_check
      _
    $region3: #{tpu_custom_call.1} parent=1 // pred_check_branch
      %9 = sbr.rel (0) target = $region5
    $region4: #{tpu_custom_call.1} parent=1 // pred_region
      %s11 = ssub.s32 256, 256
      %12 = vsyncadd [#allocation3], %s11
      %s13 = sshll.u32 [#allocation2], 4
      %s14 = int_to_ptr.vmem [resolvable:$true] %s13
      %19 = dma.hbm_to_vmem [thread:$0]  %s0, 256, %s14, [#allocation3], 128, 128, 8
    $region5: #{tpu_custom_call.1} parent=1 // pred_fallthru
      _
    // Predicated region
    $region6: #{tpu_custom_call.1} parent=1 // pred_check
      _
    $region7: #{tpu_custom_call.1} parent=1 // pred_check_branch
      %21 = sbr.rel (0) target = $region9
    $region8: #{tpu_custom_call.1} parent=1 // pred_region
      %22 = dma.done [#allocation3], 256
    $region9: #{tpu_custom_call.1} parent=1 // pred_fallthru
      _
    %v23 = vld [vmem:[#allocation2] sm:$0xff]
    %v24 = vld [vmem:[#allocation2 + $0x8] sm:$0xff]
    %v25 = vmul.f32 %v23, 0.5
    %v26 = vmul.f32 %v24, 0.5
    %v27 = vand.u32 2147483647, %v23
    %v28 = vand.u32 2147483647, %v24
    %v29 = vmul.f32 %v25, %v27
    %v30 = vmul.f32 %v26, %v28
    %v31 = vmax.f32 %v29, 0.0
    %v32 = vmax.f32 %v30, 0.0
    %v33 = vmin.f32 %v31, 0.5
    %v34 = vmin.f32 %v32, 0.5
    %v35 = vadd.f32 %v23, -0.5
    %v36 = vadd.f32 %v24, -0.5
    %v37 = vmax.f32 %v33, %v35
    %v38 = vmax.f32 %v34, %v36
    %39 = vst [vmem:[#allocation5] sm:$0xff] %v37
    %40 = vst [vmem:[#allocation5 + $0x8] sm:$0xff] %v38
    // Predicated region
    $region10: #{tpu_custom_call.1} parent=1 // pred_check
      _
    $region11: #{tpu_custom_call.1} parent=1 // pred_check_branch
      %42 = sbr.rel (0) target = $region13
    $region12: #{tpu_custom_call.1} parent=1 // pred_region
      %s44 = ssub.s32 256, 256
      %45 = vsyncadd [#allocation4], %s44
      %s46 = sshll.u32 [#allocation5], 4
      %s47 = int_to_ptr.vmem [resolvable:$true] %s46
      %52 = dma.vmem_to_hbm [thread:$0]  %s47, 256, %s1, [#allocation4], 128, 128, 8
    $region13: #{tpu_custom_call.1} parent=1 // pred_fallthru
      _
    // Predicated region
    $region14: #{tpu_custom_call.1} parent=1 // pred_check
      _
    $region15: #{tpu_custom_call.1} parent=1 // pred_check_branch
      %54 = sbr.rel (0) target = $region17
    $region16: #{tpu_custom_call.1} parent=1 // pred_region
      %55 = dma.done [#allocation4], 256
    $region17: #{tpu_custom_call.1} parent=1 // pred_fallthru
      _
    %56 = vsyncpa [#allocation3], 1
    %57 = vsyncpa [#allocation4], 1

</llo_original>
